<compile_context>
chip_gen: v5e
topology: v5e:2x2
jax: 0.10.0
libtpu: 0.0.40
codegen_flags: <defaults>
</compile_context>

<pallas_src>
import jax
import jax.numpy as jnp
from jax.experimental import pallas as pl
from jax.experimental.pallas import tpu as pltpu


def _mesh_unpool_kernel(f_ref, g_ref, occ_ref, o_ref):
    # f_ref:   (bb, nf, E)  float32 features
    # g_ref:   (bb, E,  tt) bfloat16 binary group matrix (exact 0/1 values)
    # occ_ref: (bb, 1,  tt) float32 occurrence counts (>= 1)
    # o_ref:   (bb, nf, tt) float32 output
    prod = jnp.einsum(
        "bfe,bet->bft",
        f_ref[...],
        g_ref[...].astype(jnp.float32),        # exact upcast of 0/1 values
        preferred_element_type=jnp.float32,    # MXU matmul, f32 accumulate
    )
    # Scale the small (nf, tt) result instead of the big (E, tt) matrix.
    inv_occ = pl.reciprocal(occ_ref[...], approx=True)   # EUP slot; occ >= 1
    o_ref[...] = (prod * inv_occ).astype(o_ref.dtype)


def _tile_vmem_bytes(bb, nf, E, tt):
    feat = bb * nf * E * 4      # f32 feature tile
    grp = bb * E * tt * 2       # bf16 unroll tile
    occ = bb * tt * 4           # f32 occurrence tile
    out = bb * nf * tt * 4      # f32 output tile
    return 2 * (feat + grp + occ + out)   # x2 for double buffering


def _choose_blocks(B, nf, E, T, budget_bytes):
    """Pick (batch_block, t_block) so double-buffered tiles fit the VMEM budget."""
    # Fold batch elements per grid step for bigger DMAs, but keep >= 2 steps on
    # the parallel batch axis so v7x megacore can shard it across both TCs.
    bb = max(1, B // 2)
    while bb > 1 and B % bb != 0:
        bb -= 1
    while True:
        if T % 128 != 0:
            tt = T   # non-aligned T: block must equal the full dim
        else:
            cands = sorted((c for c in range(128, T + 1, 128) if T % c == 0),
                           reverse=True)
            tt = next((c for c in cands
                       if _tile_vmem_bytes(bb, nf, E, c) <= budget_bytes),
                      cands[-1])
        if bb == 1 or _tile_vmem_bytes(bb, nf, E, tt) <= budget_bytes:
            return bb, tt
        bb = max(1, bb // 2)
        while bb > 1 and B % bb != 0:
            bb -= 1


def mesh_unpool(features, unroll_mat, occurrences, *,
                batch_block=None, t_block=None,
                vmem_budget_bytes=24 * 1024 * 1024):
    """features: (B, nf, E) f32; unroll_mat: (B, E, T) binary; occurrences: (B, 1, T)."""
    B, nf, E = features.shape
    T = unroll_mat.shape[-1]

    # Binary group matrix: bf16 is exact for 0/1 and halves its HBM traffic.
    # (Callers should ideally build unroll_mat in bf16 directly and skip this cast.)
    unroll_bf16 = unroll_mat.astype(jnp.bfloat16)
    occurrences = occurrences.astype(jnp.float32)

    auto_bb, auto_tt = _choose_blocks(B, nf, E, T, vmem_budget_bytes)
    bb = batch_block if batch_block is not None else auto_bb
    tt = t_block if t_block is not None else auto_tt
    assert B % bb == 0 and T % tt == 0

    grid = (B // bb, T // tt)

    return pl.pallas_call(
        _mesh_unpool_kernel,
        out_shape=jax.ShapeDtypeStruct((B, nf, T), features.dtype),
        grid_spec=pltpu.PrefetchScalarGridSpec(
            num_scalar_prefetch=0,
            grid=grid,
            in_specs=[
                pl.BlockSpec((bb, nf, E), lambda b, t: (b, 0, 0)),
                pl.BlockSpec((bb, E, tt), lambda b, t: (b, 0, t)),
                pl.BlockSpec((bb, 1, tt), lambda b, t: (b, 0, t)),
            ],
            out_specs=pl.BlockSpec((bb, nf, tt), lambda b, t: (b, 0, t)),
        ),
        compiler_params=pltpu.CompilerParams(
            # E is never tiled across the grid, so every grid step writes an
            # independent output block -> both axes are fully parallel.
            dimension_semantics=("parallel", "parallel"),
            vmem_limit_bytes=32 * 1024 * 1024,
        ),
    )(features, unroll_bf16, occurrences)


# ---------------------------------------------------------------------------
# Glue that mimics MeshUnpool.pad_groups / pad_occurrences on synthetic meshes
# ---------------------------------------------------------------------------
def pad_group(group, unroll_start, unroll_target):
    start, end = group.shape
    return jnp.pad(
        group,
        ((0, unroll_start - start), (0, unroll_target - end)),
        constant_values=0.0,
    )


def pad_occurrences(occ, unroll_target):
    return jnp.pad(occ, (0, unroll_target - occ.shape[0]), constant_values=1.0)


if __name__ == "__main__":
    key = jax.random.PRNGKey(0)

    # Small but TPU-aligned shapes.
    batch_size = 2          # number of meshes
    nf = 8                  # feature channels
    edges = 128             # current number of edges (E)
    unroll_target = 256     # target number of edges after unpooling (T)

    # Per-mesh "raw" group / occurrence sizes (before padding), as a real
    # MeshCNN mesh would provide.
    raw_rows = [112, 120]   # <= edges
    raw_cols = [224, 240]   # <= unroll_target

    k_feat, k_g0, k_g1 = jax.random.split(key, 3)
    features = jax.random.normal(k_feat, (batch_size, nf, edges), dtype=jnp.float32)

    groups, occs = [], []
    for r, c, kg in zip(raw_rows, raw_cols, [k_g0, k_g1]):
        # Synthetic binary group matrix (deterministic), as mesh.get_groups()
        g = (jax.random.uniform(kg, (r, c)) < 0.03).astype(jnp.float32)
        # Synthetic occurrence counts >= 1, as mesh.get_occurrences()
        occ = 1.0 + jnp.mod(jnp.arange(c, dtype=jnp.float32), 3.0)
        groups.append(pad_group(g, edges, unroll_target))
        occs.append(pad_occurrences(occ, unroll_target))

    # torch.cat(groups, 0).view(B, edges, -1)  /  cat(occ).view(B, 1, -1)
    unroll_mat = jnp.stack(groups, axis=0)                    # (B, E, T)
    occurrences = jnp.stack(occs, axis=0)[:, None, :]         # (B, 1, T)

    # TODO(synk): mesh.unroll_gemm() mutates host-side mesh bookkeeping only;
    # it has no tensor compute and is intentionally omitted.

    out = mesh_unpool(features, unroll_mat, occurrences)
    out = jax.block_until_ready(out)

    # Reference check against plain JAX (same math as the PyTorch forward).
    # Tolerance is relaxed slightly because the kernel applies 1/occ via an
    # approximate (EUP) reciprocal after the matmul; the matmul itself is exact.
    ref = jnp.matmul(features, unroll_mat / occurrences)
    assert out.shape == (batch_size, nf, unroll_target)
    assert jnp.allclose(out, ref, atol=1e-2, rtol=1e-2)

    print("KERNEL_OK")
</pallas_src>

<mosaic_0001>
module attributes {stable_mosaic.version = 11 : i64} {
  func.func @_mesh_unpool_kernel(%arg0: i32, %arg1: i32, %arg2: memref<1x8x128xf32, #tpu.memory_space<vmem>>, %arg3: memref<1x128x256xbf16, #tpu.memory_space<vmem>>, %arg4: memref<1x1x256xf32, #tpu.memory_space<vmem>>, %arg5: memref<1x8x256xf32, #tpu.memory_space<vmem>>) attributes {dimension_semantics = [#tpu.dimension_semantics<parallel>, #tpu.dimension_semantics<parallel>], iteration_bounds = array<i64: 2, 1>, scalar_prefetch = 0 : i64, scratch_operands = 0 : i64, tpu.core_type = #tpu.core_type<tc>, window_params = [{transform_indices = @transform_0, window_bounds = array<i64: 1, 8, 128>}, {transform_indices = @transform_1, window_bounds = array<i64: 1, 128, 256>}, {transform_indices = @transform_2, window_bounds = array<i64: 1, 1, 256>}, {transform_indices = @transform_3, window_bounds = array<i64: 1, 8, 256>}]} {
    %c0 = arith.constant 0 : index
    %c0_0 = arith.constant 0 : index
    %c0_1 = arith.constant 0 : index
    %0 = vector.load %arg2[%c0, %c0_0, %c0_1] : memref<1x8x128xf32, #tpu.memory_space<vmem>>, vector<1x8x128xf32>
    %c0_2 = arith.constant 0 : index
    %c0_3 = arith.constant 0 : index
    %c0_4 = arith.constant 0 : index
    %1 = vector.load %arg3[%c0_2, %c0_3, %c0_4] : memref<1x128x256xbf16, #tpu.memory_space<vmem>>, vector<1x128x256xbf16>
    %2 = arith.extf %1 : vector<1x128x256xbf16> to vector<1x128x256xf32>
    "tpu.trace_start"() <{level = 10 : i32, message = "bfe,bet->bft"}> : () -> ()
    %cst = arith.constant dense<0.000000e+00> : vector<1x8x256xf32>
    %3 = tpu.matmul %0, %2, %cst {dimension_numbers = #tpu.dot_dimension_numbers<[2], [1], [1], [2], [0, 0, 0, 1, 1, 2], [0], [0]>} : vector<1x8x128xf32>, vector<1x128x256xf32>, vector<1x8x256xf32> -> vector<1x8x256xf32>
    "tpu.trace_stop"() : () -> ()
    %c0_5 = arith.constant 0 : index
    %c0_6 = arith.constant 0 : index
    %c0_7 = arith.constant 0 : index
    %4 = vector.load %arg4[%c0_5, %c0_6, %c0_7] : memref<1x1x256xf32, #tpu.memory_space<vmem>>, vector<1x1x256xf32>
    %5 = tpu.reciprocal %4 {approx = true} : vector<1x1x256xf32> -> vector<1x1x256xf32>
    %6 = vector.broadcast %5 : vector<1x1x256xf32> to vector<1x8x256xf32>
    %7 = arith.mulf %3, %6 : vector<1x8x256xf32>
    %c0_8 = arith.constant 0 : index
    %c0_9 = arith.constant 0 : index
    %c0_10 = arith.constant 0 : index
    %8 = vector.load %arg5[%c0_8, %c0_9, %c0_10] : memref<1x8x256xf32, #tpu.memory_space<vmem>>, vector<1x8x256xf32>
    tpu.vector_store %arg5[%c0_8, %c0_9, %c0_10], %7 {strides = array<i32>} : memref<1x8x256xf32, #tpu.memory_space<vmem>>, vector<1x8x256xf32>,
    return
  }
  func.func @transform_0(%arg0: i32, %arg1: i32) -> (i32, i32, i32) {
    %c0_i32 = arith.constant 0 : i32
    %c0_i32_0 = arith.constant 0 : i32
    %c0_i32_1 = arith.constant 0 : i32
    return %arg0, %c0_i32, %c0_i32_0 : i32, i32, i32
  }
  func.func @transform_1(%arg0: i32, %arg1: i32) -> (i32, i32, i32) {
    %c0_i32 = arith.constant 0 : i32
    %c0_i32_0 = arith.constant 0 : i32
    return %arg0, %c0_i32, %arg1 : i32, i32, i32
  }
  func.func @transform_2(%arg0: i32, %arg1: i32) -> (i32, i32, i32) {
    %c0_i32 = arith.constant 0 : i32
    %c0_i32_0 = arith.constant 0 : i32
    return %arg0, %c0_i32, %arg1 : i32, i32, i32
  }
  func.func @transform_3(%arg0: i32, %arg1: i32) -> (i32, i32, i32) {
    %c0_i32 = arith.constant 0 : i32
    %c0_i32_0 = arith.constant 0 : i32
    return %arg0, %c0_i32, %arg1 : i32, i32, i32
  }
}

</mosaic_0001>

<llo_original>
// kernel: tpu_custom_call.1
$region0: #{tpu_custom_call.1}
  #allocation0 [shape = 'u32[]', space=smem, size = 0x4, offset = 0x4, fixed_abs, tag = 'smem constant byte address 0x4 - core index']
  #allocation1 [shape = 'u32[72,128]{1,0:T(1,128)}', space=vmem, size = 0x9000, scoped, tag = 'internal scratch']
  %s0 = inlined_call_operand.hbm [shape: f32[2,8,128], index: 0, kind: input, shape index: {}]
  %s1 = inlined_call_operand.hbm [shape: bf16[2,128,256], index: 1, kind: input, shape index: {}]
  %s2 = inlined_call_operand.hbm [shape: f32[2,1,256], index: 2, kind: input, shape index: {}]
  %s3 = inlined_call_operand.hbm [shape: f32[2,8,256], index: 3, kind: output, shape index: {}]
  %s4 = sld [smem:[#allocation0]]
  $region57: #{tpu_custom_call.1} parent=0
    _
  %s6 = ssub.s32 1, %s4
  %s7 = scalar_select 0, %s6, %s4
  $region1: #{tpu_custom_call.1} parent=0
    #allocation2 [shape = 'u8[8192]{0}', space=vmem, size = 0x2000, scoped, tag = 'input window, operand 0']
    #allocation3 [shape = 's32[2]{0}', space=sflag, size = 0x8, scoped, tag = 'scoped memory for tpu_custom_call.1']
    #allocation4 [shape = 's32[2]{0}', space=sflag, size = 0x8, scoped, tag = 'scoped memory for tpu_custom_call.1']
    #allocation5 [shape = 'u8[131072]{0}', space=vmem, size = 0x20000, scoped, tag = 'input window, operand 1']
    #allocation6 [shape = 's32[2]{0}', space=sflag, size = 0x8, scoped, tag = 'scoped memory for tpu_custom_call.1']
    #allocation7 [shape = 'u8[2048]{0}', space=vmem, size = 0x800, scoped, tag = 'input window, operand 2']
    #allocation8 [shape = 'u8[16384]{0}', space=vmem, size = 0x4000, scoped, tag = 'output window, operand 0']
    %8 = vsyncpa [#allocation3], 0
    %s9 = scalar_lea.sflag [#allocation3], 1
    %10 = vsyncpa %s9, 0
    %11 = vsyncpa [#allocation6], 0
    %s12 = scalar_lea.sflag [#allocation6], 1
    %13 = vsyncpa %s12, 0
    %14 = vsyncpa [#allocation4], 0
    %s15 = scalar_lea.sflag [#allocation4], 1
    %16 = vsyncpa %s15, 0
    loop: start=0, step=1, limit=4
    $region2: #{tpu_custom_call.1} parent=1 // loop_pre_header
      _
    $region3: #{tpu_custom_call.1} parent=1 // loop_header
      %s18 = sphi 0, %s22
      %p19 = scmp.ge.s32.totalorder %s18, 4
      %s25 = sphi 0, %s37
      %s26 = sphi 0, %s33
      %s27 = sphi 0, %s25
      %s28 = sphi 0, %s26
      %s29 = sphi 0, %s27
      %s30 = sphi 0, %s28
      %s40 = sphi 0, %s42
      %s43 = sphi 0, %s40
      %s44 = sphi 0, %s43
      %s60 = sphi 0, %s44
      %s68 = sphi 0, %s70
      %s71 = sphi 0, %s68
      %s72 = sphi 0, %s71
      %s88 = sphi 0, %s72
      %s96 = sphi 0, %s98
      %s99 = sphi 0, %s96
      %s100 = sphi 0, %s99
      %s116 = sphi 0, %s100
      %s124 = sphi 0, %s126
      %s127 = sphi 0, %s124
      %s128 = sphi 0, %s127
      %s144 = sphi 0, %s128
    $region4: #{tpu_custom_call.1} parent=1 // loop_header_branch
      %21 = sbr.rel (%p19) target = $region8
    $region5: #{tpu_custom_call.1} parent=1 // loop_body
      %s23 = ssub.s32 %s18, 1
      %s24 = ssub.s32 %s18, 2
      %s31 = sadd.s32 1, %s26
      %p32 = scmp.ge.s32.totalorder %s31, 1
      %s33 = scalar_select %p32, 0, %s31
      %s34 = sadd.s32 1, %s25
      %s35 = scalar_select %p32, %s34, %s25
      %p36 = scmp.ge.s32.totalorder %s35, 2
      %s37 = scalar_select %p36, 0, %s35
      %s38 = ssub.s32 %s25, %s37
      %p39 = scmp.eq.s32.totalorder %s38, 0
      %s41 = sadd.s32 %s40, 1
      %s42 = scalar_select %p39, %s40, %s41
      %p45 = pneg %p39
      %p46 = scmp.eq.s32.totalorder %s18, 1
      %p47 = por %p45, %p46
      %p48 = scmp.ne.s32.totalorder %s40, %s43
      %p49 = scmp.eq.s32.totalorder %s18, 0
      %p50 = por %p48, %p49
      %p51 = scmp.ne.s32.totalorder %s40, %s43
      %p52 = scmp.eq.s32.totalorder %s23, 1
      %p53 = por %p51, %p52
      %p54 = scmp.ne.s32.totalorder %s43, %s44
      %p55 = scmp.eq.s32.totalorder %s23, 0
      %p56 = por %p54, %p55
      %p57 = scmp.ne.s32.totalorder %s43, %s44
      %p58 = scmp.eq.s32.totalorder %s24, 1
      %p59 = por %p57, %p58
      %p61 = scmp.ne.s32.totalorder %s44, %s60
      %p62 = scmp.eq.s32.totalorder %s24, 0
      %p63 = por %p61, %p62
      %s64 = ssub.s32 %s25, %s37
      %s65 = ssub.s32 %s26, %s33
      %s66 = sor.u32 %s64, %s65
      %p67 = scmp.eq.s32.totalorder %s66, 0
      %s69 = sadd.s32 %s68, 1
      %s70 = scalar_select %p67, %s68, %s69
      %p73 = pneg %p67
      %p74 = scmp.eq.s32.totalorder %s18, 1
      %p75 = por %p73, %p74
      %p76 = scmp.ne.s32.totalorder %s68, %s71
      %p77 = scmp.eq.s32.totalorder %s18, 0
      %p78 = por %p76, %p77
      %p79 = scmp.ne.s32.totalorder %s68, %s71
      %p80 = scmp.eq.s32.totalorder %s23, 1
      %p81 = por %p79, %p80
      %p82 = scmp.ne.s32.totalorder %s71, %s72
      %p83 = scmp.eq.s32.totalorder %s23, 0
      %p84 = por %p82, %p83
      %p85 = scmp.ne.s32.totalorder %s71, %s72
      %p86 = scmp.eq.s32.totalorder %s24, 1
      %p87 = por %p85, %p86
      %p89 = scmp.ne.s32.totalorder %s72, %s88
      %p90 = scmp.eq.s32.totalorder %s24, 0
      %p91 = por %p89, %p90
      %s92 = ssub.s32 %s25, %s37
      %s93 = ssub.s32 %s26, %s33
      %s94 = sor.u32 %s92, %s93
      %p95 = scmp.eq.s32.totalorder %s94, 0
      %s97 = sadd.s32 %s96, 1
      %s98 = scalar_select %p95, %s96, %s97
      %p101 = pneg %p95
      %p102 = scmp.eq.s32.totalorder %s18, 1
      %p103 = por %p101, %p102
      %p104 = scmp.ne.s32.totalorder %s96, %s99
      %p105 = scmp.eq.s32.totalorder %s18, 0
      %p106 = por %p104, %p105
      %p107 = scmp.ne.s32.totalorder %s96, %s99
      %p108 = scmp.eq.s32.totalorder %s23, 1
      %p109 = por %p107, %p108
      %p110 = scmp.ne.s32.totalorder %s99, %s100
      %p111 = scmp.eq.s32.totalorder %s23, 0
      %p112 = por %p110, %p111
      %p113 = scmp.ne.s32.totalorder %s99, %s100
      %p114 = scmp.eq.s32.totalorder %s24, 1
      %p115 = por %p113, %p114
      %p117 = scmp.ne.s32.totalorder %s100, %s116
      %p118 = scmp.eq.s32.totalorder %s24, 0
      %p119 = por %p117, %p118
      %s120 = ssub.s32 %s25, %s37
      %s121 = ssub.s32 %s26, %s33
      %s122 = sor.u32 %s120, %s121
      %p123 = scmp.eq.s32.totalorder %s122, 0
      %s125 = sadd.s32 %s124, 1
      %s126 = scalar_select %p123, %s124, %s125
      %p129 = pneg %p123
      %p130 = scmp.eq.s32.totalorder %s18, 1
      %p131 = por %p129, %p130
      %p132 = scmp.ne.s32.totalorder %s124, %s127
      %p133 = scmp.eq.s32.totalorder %s18, 0
      %p134 = por %p132, %p133
      %p135 = scmp.ne.s32.totalorder %s124, %s127
      %p136 = scmp.eq.s32.totalorder %s23, 1
      %p137 = por %p135, %p136
      %p138 = scmp.ne.s32.totalorder %s127, %s128
      %p139 = scmp.eq.s32.totalorder %s23, 0
      %p140 = por %p138, %p139
      %p141 = scmp.ne.s32.totalorder %s127, %s128
      %p142 = scmp.eq.s32.totalorder %s24, 1
      %p143 = por %p141, %p142
      %p145 = scmp.ne.s32.totalorder %s128, %s144
      %p146 = scmp.eq.s32.totalorder %s24, 0
      %p147 = por %p145, %p146
      %p148 = scmp.le.s32.totalorder 1, %s18
      %p149 = scmp.lt.s32.totalorder %s18, 3
      %p150 = pnand %p148, %p149
      %p151 = pneg %p150
      // Predicated region
      $region9: #{tpu_custom_call.1} parent=5 // pred_check
        _
      $region10: #{tpu_custom_call.1} parent=5 // pred_check_branch
        %153 = sbr.rel (%p150) target = $region12
      $region11: #{tpu_custom_call.1} parent=5 // pred_region
        %s154 = ssub.s32 %s18, 1
      $region12: #{tpu_custom_call.1} parent=5 // pred_fallthru
        _
      %p155 = scmp.lt.s32.totalorder %s18, 2
      // Predicated region
      $region13: #{tpu_custom_call.1} parent=5 // pred_check
        %p156 = pneg %p155
      $region14: #{tpu_custom_call.1} parent=5 // pred_check_branch
        %158 = sbr.rel (%p156) target = $region16
      $region15: #{tpu_custom_call.1} parent=5 // pred_region
        // Predicated region
        $region17: #{tpu_custom_call.1} parent=15 // pred_check
          %p159 = pneg %p50
        $region18: #{tpu_custom_call.1} parent=15 // pred_check_branch
          %161 = sbr.rel (%p159) target = $region20
        $region19: #{tpu_custom_call.1} parent=15 // pred_region
          %s162 = sand.u32 %s40, 1
          %s163 = scalar_lea.sflag [#allocation3], %s162
          %s164 = sand.u32 %s40, 1
          %s165 = smul.addr %s164, 8
          %s166 = scalar_lea.vmem [#allocation2], %s165
          %168 = vsyncadd %s163, 0
          %s169 = smul.addr %s25, 8
          %s170 = scalar_lea.hbm %s0, %s169
          %s172 = sshll.u32 %s170, 4
          %s173 = int_to_ptr.hbm [resolvable:$true] %s172
          %s174 = sshll.u32 %s166, 4
          %s175 = int_to_ptr.vmem [resolvable:$true] %s174
          %177 = dma.hbm_to_vmem [thread:$0]  %s173, 128, %s175, %s163
        $region20: #{tpu_custom_call.1} parent=15 // pred_fallthru
          _
        // Predicated region
        $region21: #{tpu_custom_call.1} parent=15 // pred_check
          %p178 = pneg %p78
        $region22: #{tpu_custom_call.1} parent=15 // pred_check_branch
          %180 = sbr.rel (%p178) target = $region24
        $region23: #{tpu_custom_call.1} parent=15 // pred_region
          %s181 = sand.u32 %s18, 1
          %s182 = scalar_lea.sflag [#allocation6], %s181
          %s183 = sand.u32 %s68, 1
          %s184 = smul.addr %s183, 128
          %s185 = scalar_lea.vmem [#allocation5], %s184
          %s186 = smul.u32 2, %s26
          %188 = vsyncadd %s182, 0
          %s189 = smul.addr %s25, 32
          %s190 = sadd.s32 %s186, %s189
          %s191 = smul.addr %s190, 4
          %s192 = scalar_lea.hbm %s1, %s191
          %s193 = sshll.u32 %s192, 4
          %s194 = int_to_ptr.hbm [resolvable:$true] %s193
          %s195 = sshll.u32 %s185, 4
          %s196 = int_to_ptr.vmem [resolvable:$true] %s195
          %201 = dma.hbm_to_vmem [thread:$0]  %s194, 2048, %s196, %s182, 128, 128, 8
        $region24: #{tpu_custom_call.1} parent=15 // pred_fallthru
          _
        // Predicated region
        $region25: #{tpu_custom_call.1} parent=15 // pred_check
          %p202 = pneg %p106
        $region26: #{tpu_custom_call.1} parent=15 // pred_check_branch
          %204 = sbr.rel (%p202) target = $region28
        $region27: #{tpu_custom_call.1} parent=15 // pred_region
          %s205 = sand.u32 %s18, 1
          %s206 = scalar_lea.sflag [#allocation6], %s205
          %s207 = sand.u32 %s96, 1
          %s208 = smul.addr %s207, 2
          %s209 = scalar_lea.vmem [#allocation7], %s208
          %s210 = smul.u32 2, %s26
          %212 = vsyncadd %s206, 0
          %s213 = smul.addr %s25, 2
          %s214 = sadd.s32 %s210, %s213
          %s215 = scalar_lea.hbm %s2, %s214
          %s217 = sshll.u32 %s215, 4
          %s218 = int_to_ptr.hbm [resolvable:$true] %s217
          %s219 = sshll.u32 %s209, 4
          %s220 = int_to_ptr.vmem [resolvable:$true] %s219
          %222 = dma.hbm_to_vmem [thread:$0]  %s218, 32, %s220, %s206
        $region28: #{tpu_custom_call.1} parent=15 // pred_fallthru
          _
      $region16: #{tpu_custom_call.1} parent=5 // pred_fallthru
        _
      %p223 = scmp.le.s32.totalorder 1, %s18
      %p224 = scmp.lt.s32.totalorder %s18, 3
      %p225 = pnand %p223, %p224
      %p226 = pneg %p225
      // Predicated region
      $region29: #{tpu_custom_call.1} parent=5 // pred_check
        _
      $region30: #{tpu_custom_call.1} parent=5 // pred_check_branch
        %228 = sbr.rel (%p225) target = $region32
      $region31: #{tpu_custom_call.1} parent=5 // pred_region
        %s229 = ssub.s32 %s18, 1
        %s230 = sand.u32 %s43, 1
        %s231 = scalar_lea.sflag [#allocation3], %s230
        %s232 = sand.u32 %s43, 1
        %s233 = smul.addr %s232, 8
        %s234 = scalar_lea.vmem [#allocation2], %s233
        // Predicated region
        $region33: #{tpu_custom_call.1} parent=31 // pred_check
          %p235 = pneg %p56
        $region34: #{tpu_custom_call.1} parent=31 // pred_check_branch
          %237 = sbr.rel (%p235) target = $region36
        $region35: #{tpu_custom_call.1} parent=31 // pred_region
          %239 = dma.done %s231, 128
        $region36: #{tpu_custom_call.1} parent=31 // pred_fallthru
          _
        %s240 = sand.u32 %s23, 1
        %s241 = scalar_lea.sflag [#allocation6], %s240
        %s242 = sand.u32 %s71, 1
        %s243 = smul.addr %s242, 128
        %s244 = scalar_lea.vmem [#allocation5], %s243
        // Predicated region
        $region37: #{tpu_custom_call.1} parent=31 // pred_check
          %p245 = pneg %p84
        $region38: #{tpu_custom_call.1} parent=31 // pred_check_branch
          %247 = sbr.rel (%p245) target = $region40
        $region39: #{tpu_custom_call.1} parent=31 // pred_region
          %249 = dma.done %s241, 2048
        $region40: #{tpu_custom_call.1} parent=31 // pred_fallthru
          _
        %s250 = sand.u32 %s23, 1
        %s251 = scalar_lea.sflag [#allocation6], %s250
        %s252 = sand.u32 %s99, 1
        %s253 = smul.addr %s252, 2
        %s254 = scalar_lea.vmem [#allocation7], %s253
        // Predicated region
        $region41: #{tpu_custom_call.1} parent=31 // pred_check
          %p255 = pneg %p112
        $region42: #{tpu_custom_call.1} parent=31 // pred_check_branch
          %257 = sbr.rel (%p255) target = $region44
        $region43: #{tpu_custom_call.1} parent=31 // pred_region
          %259 = dma.done %s251, 32
        $region44: #{tpu_custom_call.1} parent=31 // pred_fallthru
          _
        %s260 = sand.u32 %s43, 1
        %s261 = scalar_lea.sflag [#allocation3], %s260
        %s262 = sand.u32 %s43, 1
        %s263 = smul.addr %s262, 8
        %s264 = scalar_lea.vmem [#allocation2], %s263
        %p265 = pneg %p56
        %p266 = pneg %p53
        %s267 = sand.u32 %s23, 1
        %s268 = scalar_lea.sflag [#allocation6], %s267
        %s269 = sand.u32 %s71, 1
        %s270 = smul.addr %s269, 128
        %s271 = scalar_lea.vmem [#allocation5], %s270
        %p272 = pneg %p84
        %p273 = pneg %p81
        %s274 = sand.u32 %s23, 1
        %s275 = scalar_lea.sflag [#allocation6], %s274
        %s276 = sand.u32 %s99, 1
        %s277 = smul.addr %s276, 2
        %s278 = scalar_lea.vmem [#allocation7], %s277
        %p279 = pneg %p112
        %p280 = pneg %p109
        %p281 = pneg %p140
        %p282 = pneg %p137
        %s283 = sand.u32 %s127, 1
        %s284 = scalar_lea.sflag [#allocation4], %s283
        %s285 = sand.u32 %s127, 1
        %s286 = smul.addr %s285, 16
        %s287 = scalar_lea.vmem [#allocation8], %s286
        %s288 = smul.u32 2, %s28
        %s289 = smul.u32 2, %s28
        %s290 = smul.u32 2, %s28
        %v291 = vld [vmem:[%s234] sm:$0xff]
        %v292 = vld [vmem:[%s244] sm:$0xff]
        %v293 = vld [vmem:[%s244 + $0x8] sm:$0xff]
        %v294 = vld [vmem:[%s244 + $0x10] sm:$0xff]
        %v295 = vld [vmem:[%s244 + $0x18] sm:$0xff]
        %v296 = vld [vmem:[%s244 + $0x20] sm:$0xff]
        %v297 = vld [vmem:[%s244 + $0x28] sm:$0xff]
        %v298 = vld [vmem:[%s244 + $0x30] sm:$0xff]
        %v299 = vld [vmem:[%s244 + $0x38] sm:$0xff]
        %v300 = vld [vmem:[%s244 + $0x40] sm:$0xff]
        %v301 = vld [vmem:[%s244 + $0x48] sm:$0xff]
        %v302 = vld [vmem:[%s244 + $0x50] sm:$0xff]
        %v303 = vld [vmem:[%s244 + $0x58] sm:$0xff]
        %v304 = vld [vmem:[%s244 + $0x60] sm:$0xff]
        %v305 = vld [vmem:[%s244 + $0x68] sm:$0xff]
        %v306 = vld [vmem:[%s244 + $0x70] sm:$0xff]
        %v307 = vld [vmem:[%s244 + $0x78] sm:$0xff]
        %v308 = vunpack.c.l.bf16 %v292
        %v309 = vunpack.c.h.bf16 %v292
        %v310 = vunpack.c.l.bf16 %v293
        %v311 = vunpack.c.h.bf16 %v293
        %v312 = vunpack.c.l.bf16 %v294
        %v313 = vunpack.c.h.bf16 %v294
        %v314 = vunpack.c.l.bf16 %v295
        %v315 = vunpack.c.h.bf16 %v295
        %v316 = vunpack.c.l.bf16 %v296
        %v317 = vunpack.c.h.bf16 %v296
        %v318 = vunpack.c.l.bf16 %v297
        %v319 = vunpack.c.h.bf16 %v297
        %v320 = vunpack.c.l.bf16 %v298
        %v321 = vunpack.c.h.bf16 %v298
        %v322 = vunpack.c.l.bf16 %v299
        %v323 = vunpack.c.h.bf16 %v299
        %v324 = vunpack.c.l.bf16 %v300
        %v325 = vunpack.c.h.bf16 %v300
        %v326 = vunpack.c.l.bf16 %v301
        %v327 = vunpack.c.h.bf16 %v301
        %v328 = vunpack.c.l.bf16 %v302
        %v329 = vunpack.c.h.bf16 %v302
        %v330 = vunpack.c.l.bf16 %v303
        %v331 = vunpack.c.h.bf16 %v303
        %v332 = vunpack.c.l.bf16 %v304
        %v333 = vunpack.c.h.bf16 %v304
        %v334 = vunpack.c.l.bf16 %v305
        %v335 = vunpack.c.h.bf16 %v305
        %v336 = vunpack.c.l.bf16 %v306
        %v337 = vunpack.c.h.bf16 %v306
        %v338 = vunpack.c.l.bf16 %v307
        %v339 = vunpack.c.h.bf16 %v307
        %340 = vmatpush.msra.mxu0 %v338
        %341 = vmatpush.msra.mxu0 %v336
        %342 = vmatpush.msra.mxu0 %v334
        %343 = vmatpush.msra.mxu0 %v332
        %344 = vmatpush.msra.mxu0 %v330
        %345 = vmatpush.msra.mxu0 %v328
        %346 = vmatpush.msra.mxu0 %v326
        %347 = vmatpush.msra.mxu0 %v324
        %348 = vmatpush.msra.mxu0 %v322
        %349 = vmatpush.msra.mxu0 %v320
        %350 = vmatpush.msra.mxu0 %v318
        %351 = vmatpush.msra.mxu0 %v316
        %352 = vmatpush.msra.mxu0 %v314
        %353 = vmatpush.msra.mxu0 %v312
        %354 = vmatpush.msra.mxu0 %v310
        %355 = vmatpush.msra.mxu0 %v308
        %356 = vmatmul.f32.gmra.mxu0 %v291
        %v357 = vpop.f32.mrf.mxu0
        %v358 = vadd.f32 0.0, %v357
        %359 = vdwg.mxu0
        %360 = vmatpush.msra.mxu0 %v339
        %361 = vmatpush.msra.mxu0 %v337
        %362 = vmatpush.msra.mxu0 %v335
        %363 = vmatpush.msra.mxu0 %v333
        %364 = vmatpush.msra.mxu0 %v331
        %365 = vmatpush.msra.mxu0 %v329
        %366 = vmatpush.msra.mxu0 %v327
        %367 = vmatpush.msra.mxu0 %v325
        %368 = vmatpush.msra.mxu0 %v323
        %369 = vmatpush.msra.mxu0 %v321
        %370 = vmatpush.msra.mxu0 %v319
        %371 = vmatpush.msra.mxu0 %v317
        %372 = vmatpush.msra.mxu0 %v315
        %373 = vmatpush.msra.mxu0 %v313
        %374 = vmatpush.msra.mxu0 %v311
        %375 = vmatpush.msra.mxu0 %v309
        %376 = vmatmul.f32.gmra.mxu0 %v291
        %v377 = vpop.f32.mrf.mxu0
        %v378 = vadd.f32 0.0, %v377
        %379 = vdwg.mxu0
        %v380 = vld [vmem:[%s254] sm:$0x3]
        %v381 = vrcp.pop %v380
        %v383 = vperm.slane %v381, 0
        %v384 = vperm.slane %v381, 1
        %v387 = vmul.f32 %v358, %v383
        %v388 = vmul.f32 %v378, %v384
        %389 = vst [vmem:[%s287] sm:$0xff] %v387
        %390 = vst [vmem:[%s287 + $0x8] sm:$0xff] %v388
        %s391 = sand.u32 %s127, 1
        %s392 = scalar_lea.sflag [#allocation4], %s391
        %s393 = sand.u32 %s127, 1
        %s394 = smul.addr %s393, 16
        %s395 = scalar_lea.vmem [#allocation8], %s394
        // Predicated region
        $region45: #{tpu_custom_call.1} parent=31 // pred_check
          %p396 = pneg %p137
        $region46: #{tpu_custom_call.1} parent=31 // pred_check_branch
          %398 = sbr.rel (%p396) target = $region48
        $region47: #{tpu_custom_call.1} parent=31 // pred_region
          %s399 = smul.u32 2, %s28
          %401 = vsyncadd %s392, 0
          %s402 = smul.addr %s27, 2
          %s403 = sadd.s32 %s399, %s402
          %s404 = smul.addr %s403, 8
          %s405 = scalar_lea.hbm %s3, %s404
          %s407 = sshll.u32 %s395, 4
          %s408 = int_to_ptr.vmem [resolvable:$true] %s407
          %s409 = sshll.u32 %s405, 4
          %s410 = int_to_ptr.hbm [resolvable:$true] %s409
          %412 = dma.vmem_to_hbm [thread:$0]  %s408, 256, %s410, %s392
        $region48: #{tpu_custom_call.1} parent=31 // pred_fallthru
          _
      $region32: #{tpu_custom_call.1} parent=5 // pred_fallthru
        _
      %p413 = scmp.le.s32.totalorder 2, %s18
      // Predicated region
      $region49: #{tpu_custom_call.1} parent=5 // pred_check
        %p414 = pneg %p413
      $region50: #{tpu_custom_call.1} parent=5 // pred_check_branch
        %416 = sbr.rel (%p414) target = $region52
      $region51: #{tpu_custom_call.1} parent=5 // pred_region
        %s417 = ssub.s32 %s18, 2
        // Predicated region
        $region53: #{tpu_custom_call.1} parent=51 // pred_check
          %p418 = pneg %p143
        $region54: #{tpu_custom_call.1} parent=51 // pred_check_branch
          %420 = sbr.rel (%p418) target = $region56
        $region55: #{tpu_custom_call.1} parent=51 // pred_region
          %s421 = sand.u32 %s128, 1
          %s422 = scalar_lea.sflag [#allocation4], %s421
          %s423 = sand.u32 %s128, 1
          %s424 = smul.addr %s423, 16
          %s425 = scalar_lea.vmem [#allocation8], %s424
          %427 = dma.done %s422, 256
        $region56: #{tpu_custom_call.1} parent=51 // pred_fallthru
          _
      $region52: #{tpu_custom_call.1} parent=5 // pred_fallthru
        _
    $region6: #{tpu_custom_call.1} parent=1 // loop_footer
      %s22 = sadd.s32 1, %s18
    $region7: #{tpu_custom_call.1} parent=1 // loop_footer_branch
      %17 = sbr.rel target = $region3
    $region8: #{tpu_custom_call.1} parent=1 // loop_exit
      _
    %428 = vsyncpa [#allocation3], 1
    %s429 = scalar_lea.sflag [#allocation3], 1
    %430 = vsyncpa %s429, 1
    %431 = vsyncpa [#allocation6], 1
    %s432 = scalar_lea.sflag [#allocation6], 1
    %433 = vsyncpa %s432, 1
    %434 = vsyncpa [#allocation4], 1
    %s435 = scalar_lea.sflag [#allocation4], 1
    %436 = vsyncpa %s435, 1

</llo_original>
